<compile_context>
chip_gen: v5e
topology: v5e:2x2
jax: 0.10.0
libtpu: 0.0.40
codegen_flags: <defaults>
</compile_context>

<pallas_src>
import functools

import jax
import jax.numpy as jnp
from jax.experimental import pallas as pl
from jax.experimental.pallas import tpu as pltpu


_DEFAULT_W_RESIDENT_BUDGET = 8 << 20   # padded bf16 W kept fully VMEM-resident up to this
_TILE_BYTES_BUDGET = 4 << 20           # per-buffer budget for X / out tiles
_TK_MAX = 512                          # K tile (fallback path), multiple of 128


def _round_up(x: int, m: int) -> int:
    return (x + m - 1) // m * m


def _plan(h: int, c_pad: int, w_itemsize: int, budget: int, tk_max: int = _TK_MAX):
    """Tiling plan derived purely from static shapes (shared by prepare/infer)."""
    if h * c_pad * w_itemsize <= budget:
        # W fits VMEM: single K block (== full hidden dim), no padding of H.
        return {"resident": True, "h_pad": h, "tk": h}
    # Fallback: K-tiled.  Pad H only to a multiple of 128 and pick TK as a
    # multiple of 128 dividing H_pad (avoids large X padding).
    h_pad = _round_up(h, 128)
    tk = 128
    for cand in range(128, min(tk_max, h_pad) + 1, 128):
        if h_pad % cand == 0:
            tk = cand
    return {"resident": False, "h_pad": h_pad, "tk": tk}


def _pick_tm(b8: int, tm_cap: int) -> int:
    """Largest multiple-of-8 divisor of b8 that is <= tm_cap, preferring >= 2
    grid steps (v7x megacore) when b8 > 8."""
    target = min(tm_cap, b8 if b8 <= 8 else max(8, b8 // 2))
    tm = 8
    cand = 8
    while cand <= target:
        if b8 % cand == 0:
            tm = cand
        cand += 8
    return tm


def _vmem_limit_bytes(total_buffer_bytes: int) -> int:
    # Explicit scoped-VMEM limit: v5e default is 16 MiB; keep headroom on v7x
    # (64 MiB physical / 32 MiB default-scoped).
    return int(min(48 << 20, max(total_buffer_bytes + (4 << 20), 16 << 20)))


# ----------------------------------------------------------------------------
# Kernels
# ----------------------------------------------------------------------------
def _linear_sigmoid_resident_kernel(x_ref, w_ref, b_ref, o_ref):
    """out = sigmoid(x @ W + b), whole W resident in VMEM (single K block)."""
    # W is already bf16 (prepared once at model load); cast the X tile
    # in-kernel so the HBM stream keeps the caller's dtype (no extra pass).
    xb = x_ref[...].astype(w_ref.dtype)
    z = jnp.dot(xb, w_ref[...], preferred_element_type=jnp.float32)
    z = z + b_ref[...]                      # (1, C_pad) broadcasts over TM rows
    o_ref[...] = (1.0 / (1.0 + jnp.exp(-z))).astype(o_ref.dtype)


def _linear_sigmoid_ktiled_kernel(x_ref, w_ref, b_ref, o_ref, acc_ref):
    """Fallback when W does not fit VMEM: accumulate over the K grid axis.

    NOTE: with k as the inner grid axis the W tile is re-fetched from HBM once
    per batch tile.  This path only runs for very large W.
    # TODO(synk): for huge class counts add an N (classes) grid axis and pin W
    # via a manual emit_pipeline over batch to avoid the W re-fetch.
    """
    k = pl.program_id(1)

    @pl.when(k == 0)
    def _():
        # Fold the bias add into accumulator init.
        acc_ref[...] = jnp.broadcast_to(b_ref[...], acc_ref.shape)

    xb = x_ref[...].astype(w_ref.dtype)
    acc_ref[...] += jnp.dot(xb, w_ref[...], preferred_element_type=jnp.float32)

    @pl.when(k == pl.num_programs(1) - 1)
    def _():
        z = acc_ref[...]
        o_ref[...] = (1.0 / (1.0 + jnp.exp(-z))).astype(o_ref.dtype)


# ----------------------------------------------------------------------------
# Wrappers
# ----------------------------------------------------------------------------
def prepare_params(w, b, *, w_resident_budget: int = _DEFAULT_W_RESIDENT_BUDGET,
                   compute_dtype=jnp.bfloat16):
    """Model-load-time prep: pad classes to a lane-dense multiple of 128,
    optionally pad hidden for K tiling, and cast W to bf16 — ONCE, not per call."""
    h, c = w.shape
    c_pad = _round_up(c, 128)
    plan = _plan(h, c_pad, jnp.dtype(compute_dtype).itemsize, w_resident_budget)
    h_pad = plan["h_pad"]
    wp = jnp.zeros((h_pad, c_pad), compute_dtype).at[:h, :c].set(
        w.astype(compute_dtype))
    bp = jnp.zeros((1, c_pad), jnp.float32).at[0, :c].set(b.astype(jnp.float32))
    return wp, bp


@functools.partial(jax.jit,
                   static_argnames=("n_classes", "tm_max", "w_resident_budget"))
def inference_single(x, wp, bp, *, n_classes: int, tm_max: int = 512,
                     w_resident_budget: int = _DEFAULT_W_RESIDENT_BUDGET):
    """Equivalent of Inference_single(model).forward(x) with model=Linear(H, C).

    `wp`, `bp` come from `prepare_params` (pre-padded / pre-cast weights)."""
    b_dim, h = x.shape
    h_pad, c_pad = wp.shape
    w_item = jnp.dtype(wp.dtype).itemsize
    x_item = jnp.dtype(x.dtype).itemsize
    out_item = 4

    plan = _plan(h, c_pad, w_item, w_resident_budget)
    assert plan["h_pad"] == h_pad, "weights were prepared with a different budget"
    resident, tk = plan["resident"], plan["tk"]

    # ---- batch tiling: multiple-of-8 divisor of round_up(B, 8), capped by a
    # per-buffer VMEM budget, >= 2 grid steps when possible (v7x megacore) ----
    b8 = _round_up(b_dim, 8)
    k_span = h_pad if resident else tk
    tm_cap_x = max(8, (_TILE_BYTES_BUDGET // max(1, k_span * x_item)) // 8 * 8)
    tm_cap_o = max(8, (_TILE_BYTES_BUDGET // max(1, c_pad * out_item)) // 8 * 8)
    tm = _pick_tm(b8, min(tm_max, tm_cap_x, tm_cap_o))

    # X is only padded if the batch is not a multiple of 8 or H needs K-tiling
    # padding; in the common resident case X streams through untouched.
    xp = x
    if (b8, h_pad) != (b_dim, h):
        xp = jnp.zeros((b8, h_pad), x.dtype).at[:b_dim, :h].set(x)

    if resident:
        vmem = (2 * tm * h_pad * x_item + 2 * h_pad * c_pad * w_item
                + 2 * c_pad * 4 + 2 * tm * c_pad * out_item)
        out = pl.pallas_call(
            _linear_sigmoid_resident_kernel,
            out_shape=jax.ShapeDtypeStruct((b8, c_pad), jnp.float32),
            grid=(b8 // tm,),
            in_specs=[
                pl.BlockSpec((tm, h_pad), lambda i: (i, 0)),        # X tile
                pl.BlockSpec((h_pad, c_pad), lambda i: (0, 0)),     # W (VMEM-resident)
                pl.BlockSpec((1, c_pad), lambda i: (0, 0)),         # bias (resident)
            ],
            out_specs=pl.BlockSpec((tm, c_pad), lambda i: (i, 0)),  # lane-dense out
            compiler_params=pltpu.CompilerParams(
                dimension_semantics=("parallel",),
                vmem_limit_bytes=_vmem_limit_bytes(vmem),
            ),
        )(xp, wp, bp)
    else:
        vmem = (2 * tm * tk * x_item + 2 * tk * c_pad * w_item + 2 * c_pad * 4
                + 2 * tm * c_pad * out_item + tm * c_pad * 4)
        out = pl.pallas_call(
            _linear_sigmoid_ktiled_kernel,
            out_shape=jax.ShapeDtypeStruct((b8, c_pad), jnp.float32),
            grid=(b8 // tm, h_pad // tk),
            in_specs=[
                pl.BlockSpec((tm, tk), lambda i, k: (i, k)),        # X tile
                pl.BlockSpec((tk, c_pad), lambda i, k: (k, 0)),     # W tile (re-fetched per i)
                pl.BlockSpec((1, c_pad), lambda i, k: (0, 0)),      # bias
            ],
            out_specs=pl.BlockSpec((tm, c_pad), lambda i, k: (i, 0)),
            scratch_shapes=[pltpu.VMEM((tm, c_pad), jnp.float32)],
            compiler_params=pltpu.CompilerParams(
                dimension_semantics=("parallel", "arbitrary"),
                vmem_limit_bytes=_vmem_limit_bytes(vmem),
            ),
        )(xp, wp, bp)

    # Slice padded batch rows / class lanes back off.
    return out[:b_dim, :n_classes]


if __name__ == "__main__":
    # Small shapes consistent with the module: batch=8, hidden=32, classes=16.
    B, H, C = 8, 32, 16
    key = jax.random.PRNGKey(0)
    kx, kw, kb = jax.random.split(key, 3)

    x = jax.random.normal(kx, (B, H), dtype=jnp.float32)
    # Deterministic synthetic "model" parameters (Linear H -> C).
    w = jax.random.normal(kw, (H, C), dtype=jnp.float32) * 0.1
    b = jax.random.normal(kb, (C,), dtype=jnp.float32) * 0.1

    # "Model load": pad + cast the weights exactly once.
    wp, bp = prepare_params(w, b)

    out = inference_single(x, wp, bp, n_classes=C)
    out = jax.block_until_ready(out)

    # Reference: sigmoid(x @ w + b) with the same bf16 rounding of matmul
    # inputs that the kernel applies (accumulation stays f32).
    xb = x.astype(jnp.bfloat16).astype(jnp.float32)
    wb = w.astype(jnp.bfloat16).astype(jnp.float32)
    ref = 1.0 / (1.0 + jnp.exp(-(xb @ wb + b[None, :])))
    assert out.shape == (B, C)
    assert jnp.allclose(out, ref, atol=1e-3), "resident path mismatch"

    # Exercise the multi-step batch-tiled path (B=24 -> TM=8, 3 grid steps).
    B2 = 24
    x2 = jax.random.normal(kx, (B2, H), dtype=jnp.float32)
    out2 = jax.block_until_ready(inference_single(x2, wp, bp, n_classes=C))
    xb2 = x2.astype(jnp.bfloat16).astype(jnp.float32)
    ref2 = 1.0 / (1.0 + jnp.exp(-(xb2 @ wb + b[None, :])))
    assert jnp.allclose(out2, ref2, atol=1e-3), "multi-tile batch mismatch"

    # Exercise the K-tiled fallback kernel (force it with a zero W budget).
    wp0, bp0 = prepare_params(w, b, w_resident_budget=0)
    out3 = jax.block_until_ready(
        inference_single(x, wp0, bp0, n_classes=C, w_resident_budget=0))
    assert jnp.allclose(out3, ref, atol=1e-3), "K-tiled path mismatch"

    print("KERNEL_OK")
</pallas_src>

<mosaic_0001>
module attributes {stable_mosaic.version = 11 : i64} {
  func.func @_linear_sigmoid_resident_kernel(%arg0: i32, %arg1: memref<8x32xf32, #tpu.memory_space<vmem>>, %arg2: memref<32x128xbf16, #tpu.memory_space<vmem>>, %arg3: memref<1x128xf32, #tpu.memory_space<vmem>>, %arg4: memref<8x128xf32, #tpu.memory_space<vmem>>) attributes {dimension_semantics = [#tpu.dimension_semantics<parallel>], iteration_bounds = array<i64: 1>, scalar_prefetch = 0 : i64, scratch_operands = 0 : i64, tpu.core_type = #tpu.core_type<tc>, window_params = [{transform_indices = @transform_0, window_bounds = array<i64: 8, 32>}, {pipeline_mode = #tpu.pipeline_mode<synchronous>, transform_indices = @transform_1, window_bounds = array<i64: 32, 128>}, {pipeline_mode = #tpu.pipeline_mode<synchronous>, transform_indices = @transform_2, window_bounds = array<i64: 1, 128>}, {transform_indices = @transform_3, window_bounds = array<i64: 8, 128>}]} {
    %c0 = arith.constant 0 : index
    %c0_0 = arith.constant 0 : index
    %0 = vector.load %arg1[%c0, %c0_0] : memref<8x32xf32, #tpu.memory_space<vmem>>, vector<8x32xf32>
    %1 = arith.truncf %0 : vector<8x32xf32> to vector<8x32xbf16>
    %c0_1 = arith.constant 0 : index
    %c0_2 = arith.constant 0 : index
    %2 = vector.load %arg2[%c0_1, %c0_2] : memref<32x128xbf16, #tpu.memory_space<vmem>>, vector<32x128xbf16>
    %cst = arith.constant dense<0.000000e+00> : vector<8x128xf32>
    %3 = tpu.matmul %1, %2, %cst {dimension_numbers = #tpu.dot_dimension_numbers<[1], [0], [0], [1], [0, 0, 1, 1], [], []>} : vector<8x32xbf16>, vector<32x128xbf16>, vector<8x128xf32> -> vector<8x128xf32>
    %c0_3 = arith.constant 0 : index
    %c0_4 = arith.constant 0 : index
    %4 = vector.load %arg3[%c0_3, %c0_4] : memref<1x128xf32, #tpu.memory_space<vmem>>, vector<1x128xf32>
    %5 = vector.broadcast %4 : vector<1x128xf32> to vector<8x128xf32>
    %6 = arith.addf %3, %5 : vector<8x128xf32>
    %cst_5 = arith.constant 0.000000e+00 : f32
    %7 = vector.broadcast %cst_5 : f32 to vector<8x128xf32>
    %8 = arith.subf %7, %6 : vector<8x128xf32>
    %9 = math.exp %8 : vector<8x128xf32>
    %cst_6 = arith.constant 1.000000e+00 : f32
    %10 = vector.broadcast %cst_6 : f32 to vector<8x128xf32>
    %11 = arith.addf %10, %9 : vector<8x128xf32>
    %cst_7 = arith.constant 1.000000e+00 : f32
    %12 = vector.broadcast %cst_7 : f32 to vector<8x128xf32>
    %13 = arith.divf %12, %11 : vector<8x128xf32>
    %c0_8 = arith.constant 0 : index
    %c0_9 = arith.constant 0 : index
    %14 = vector.load %arg4[%c0_8, %c0_9] : memref<8x128xf32, #tpu.memory_space<vmem>>, vector<8x128xf32>
    tpu.vector_store %arg4[%c0_8, %c0_9], %13 {strides = array<i32>} : memref<8x128xf32, #tpu.memory_space<vmem>>, vector<8x128xf32>,
    return
  }
  func.func @transform_0(%arg0: i32) -> (i32, i32) {
    %c0_i32 = arith.constant 0 : i32
    %c0_i32_0 = arith.constant 0 : i32
    return %arg0, %c0_i32 : i32, i32
  }
  func.func @transform_1(%arg0: i32) -> (i32, i32) {
    %c0_i32 = arith.constant 0 : i32
    %c0_i32_0 = arith.constant 0 : i32
    %c0_i32_1 = arith.constant 0 : i32
    return %c0_i32, %c0_i32_0 : i32, i32
  }
  func.func @transform_2(%arg0: i32) -> (i32, i32) {
    %c0_i32 = arith.constant 0 : i32
    %c0_i32_0 = arith.constant 0 : i32
    %c0_i32_1 = arith.constant 0 : i32
    return %c0_i32, %c0_i32_0 : i32, i32
  }
  func.func @transform_3(%arg0: i32) -> (i32, i32) {
    %c0_i32 = arith.constant 0 : i32
    %c0_i32_0 = arith.constant 0 : i32
    return %arg0, %c0_i32 : i32, i32
  }
}

</mosaic_0001>

<llo_original>
// kernel: inference_single.1
$region0: #{inference_single.1}
  #allocation0 [shape = 'u32[]', space=smem, size = 0x4, offset = 0x4, fixed_abs, tag = 'smem constant byte address 0x4 - core index']
  #allocation1 [shape = 'u32[72,128]{1,0:T(1,128)}', space=vmem, size = 0x9000, scoped, tag = 'internal scratch']
  %s0 = inlined_call_operand.hbm [shape: f32[8,32], index: 0, kind: input, shape index: {}]
  %s1 = inlined_call_operand.hbm [shape: bf16[32,128], index: 1, kind: input, shape index: {}]
  %s2 = inlined_call_operand.vmem [shape: f32[1,128], index: 2, kind: input, shape index: {}]
  %s3 = inlined_call_operand.hbm [shape: f32[8,128], index: 3, kind: output, shape index: {}]
  %s4 = sld [smem:[#allocation0]]
  $region30: #{inference_single.1} parent=0
    _
  %s6 = ssub.s32 1, %s4
  %s7 = scalar_select 0, %s6, %s4
  $region1: #{inference_single.1} parent=0
    #allocation2 [shape = 'u8[4096]{0}', space=vmem, size = 0x1000, scoped, tag = 'input window, operand 0, single buffered']
    #allocation3 [shape = 's32[1]{0}', space=sflag, size = 0x4, scoped, tag = 'scoped memory for inference_single.1']
    #allocation4 [shape = 's32[1]{0}', space=sflag, size = 0x4, scoped, tag = 'scoped memory for inference_single.1']
    #allocation5 [shape = 'u8[8192]{0}', space=vmem, size = 0x2000, scoped, tag = 'input window, operand 1, single buffered']
    #allocation6 [shape = 's32[1]{0}', space=sflag, size = 0x4, scoped, tag = 'scoped memory for inference_single.1']
    #allocation7 [shape = 'u8[4096]{0}', space=vmem, size = 0x1000, scoped, tag = 'output window, operand 0, single buffered']
    %8 = vsyncpa [#allocation3], 0
    %9 = vsyncpa [#allocation6], 0
    %10 = vsyncpa [#allocation4], 0
    // Predicated region
    $region2: #{inference_single.1} parent=1 // pred_check
      _
    $region3: #{inference_single.1} parent=1 // pred_check_branch
      %12 = sbr.rel (0) target = $region5
    $region4: #{inference_single.1} parent=1 // pred_region
      %14 = vsyncadd [#allocation3], 0
      %s16 = sshll.u32 %s0, 4
      %s17 = int_to_ptr.hbm [resolvable:$true] %s16
      %s18 = sshll.u32 [#allocation2], 4
      %s19 = int_to_ptr.vmem [resolvable:$true] %s18
      %21 = dma.hbm_to_vmem [thread:$0]  %s17, 128, %s19, [#allocation3]
    $region5: #{inference_single.1} parent=1 // pred_fallthru
      _
    // Predicated region
    $region6: #{inference_single.1} parent=1 // pred_check
      _
    $region7: #{inference_single.1} parent=1 // pred_check_branch
      %23 = sbr.rel (0) target = $region9
    $region8: #{inference_single.1} parent=1 // pred_region
      %25 = vsyncadd [#allocation6], 0
      %s26 = sshll.u32 %s1, 4
      %s27 = int_to_ptr.hbm [resolvable:$true] %s26
      %s28 = sshll.u32 [#allocation5], 4
      %s29 = int_to_ptr.vmem [resolvable:$true] %s28
      %34 = dma.hbm_to_vmem [thread:$0]  %s27, 256, %s29, [#allocation6], 64, 64, 4
    $region9: #{inference_single.1} parent=1 // pred_fallthru
      _
    // Predicated region
    $region10: #{inference_single.1} parent=1 // pred_check
      _
    $region11: #{inference_single.1} parent=1 // pred_check_branch
      %36 = sbr.rel (0) target = $region13
    $region12: #{inference_single.1} parent=1 // pred_region
      _
    $region13: #{inference_single.1} parent=1 // pred_fallthru
      _
    // Predicated region
    $region14: #{inference_single.1} parent=1 // pred_check
      _
    $region15: #{inference_single.1} parent=1 // pred_check_branch
      %38 = sbr.rel (0) target = $region17
    $region16: #{inference_single.1} parent=1 // pred_region
      %40 = dma.done [#allocation3], 128
    $region17: #{inference_single.1} parent=1 // pred_fallthru
      _
    // Predicated region
    $region18: #{inference_single.1} parent=1 // pred_check
      _
    $region19: #{inference_single.1} parent=1 // pred_check_branch
      %42 = sbr.rel (0) target = $region21
    $region20: #{inference_single.1} parent=1 // pred_region
      %44 = dma.done [#allocation6], 256
    $region21: #{inference_single.1} parent=1 // pred_fallthru
      _
    %v46 = vld [vmem:[#allocation2] sm:$0xff]
    %v47 = vpack.c.bf16 %v46, %v46
    %v48 = vld [vmem:[#allocation5] sm:$0xf]
    %v49 = vld [vmem:[#allocation5 + $0x4] sm:$0xf]
    %v50 = vld [vmem:[#allocation5 + $0x8] sm:$0xf]
    %v51 = vld [vmem:[#allocation5 + $0xc] sm:$0xf]
    %v52 = vld [vmem:[%s2] sm:$0x1]
    %v54 = vperm.slane %v52, 0
    %v60 = vunpack.c.l.b16 %v48
    %v61 = vunpack.c.l.b16 %v49
    %v62 = vunpack.c.l.b16 %v50
    %v63 = vunpack.c.l.b16 %v51
    %v64 = vpack.c.b16 %v61, %v60
    %v65 = vpack.c.b16 %v63, %v62
    %vm68 = vcmask 261120
    %v70 = vsel %vm68, %v47, 0
    %72 = vmatpush.bf16.msra.mxu0 0
    %73 = vmatpush.bf16.msra.mxu0 0
    %74 = vmatpush.bf16.msra.mxu0 0
    %75 = vmatpush.bf16.msra.mxu0 0
    %76 = vmatpush.bf16.msra.mxu0 0
    %77 = vmatpush.bf16.msra.mxu0 0
    %78 = vmatpush.bf16.msra.mxu0 %v65
    %79 = vmatpush.bf16.msra.mxu0 %v64
    %80 = vmatmul.bf16.gmra.mxu0 %v70
    %v81 = vpop.f32.mrf.mxu0
    %v82 = vadd.f32 %v54, %v81
    %v83 = vpop.f32.mrf.mxu0
    %84 = vdwg.mxu0
    %v85 = vsub.f32 0.0, %v82
    %v86 = vmul.f32 %v85, 1.442695
    %v87 = vpow.pop %v86
    %v88 = vadd.f32 %v87, 1.0
    %v89 = vrcp.pop %v88
    %v90 = vmul.f32 %v88, %v89
    %v91 = vsub.f32 1.0, %v90
    %v92 = vmul.f32 %v89, %v91
    %v93 = vadd.f32 %v89, %v92
    %vm94 = vweird.f32 %v88
    %vm95 = vweird.f32 %v89
    %vm96 = vmor %vm94, %vm95
    %v97 = vsel %vm96, %v89, %v93
    %v98 = vand.u32 2147483647, %v88
    %vm99 = vcmp.eq.f32.partialorder %v98, 8.507059e+37
    %v100 = vand.u32 %v88, 2147483648
    %v101 = vor.u32 1.1754944e-38, %v100
    %v102 = vsel %vm99, %v101, %v97
    %v103 = vmul.f32 1.0, %v102
    %104 = vst [vmem:[#allocation7] sm:$0xff] %v103
    // Predicated region
    $region22: #{inference_single.1} parent=1 // pred_check
      _
    $region23: #{inference_single.1} parent=1 // pred_check_branch
      %106 = sbr.rel (0) target = $region25
    $region24: #{inference_single.1} parent=1 // pred_region
      %108 = vsyncadd [#allocation4], 0
      %s110 = sshll.u32 [#allocation7], 4
      %s111 = int_to_ptr.vmem [resolvable:$true] %s110
      %s112 = sshll.u32 %s3, 4
      %s113 = int_to_ptr.hbm [resolvable:$true] %s112
      %115 = dma.vmem_to_hbm [thread:$0]  %s111, 128, %s113, [#allocation4]
    $region25: #{inference_single.1} parent=1 // pred_fallthru
      _
    // Predicated region
    $region26: #{inference_single.1} parent=1 // pred_check
      _
    $region27: #{inference_single.1} parent=1 // pred_check_branch
      %117 = sbr.rel (0) target = $region29
    $region28: #{inference_single.1} parent=1 // pred_region
      %119 = dma.done [#allocation4], 128
    $region29: #{inference_single.1} parent=1 // pred_fallthru
      _
    %120 = vsyncpa [#allocation3], 1
    %121 = vsyncpa [#allocation6], 1
    %122 = vsyncpa [#allocation4], 1

</llo_original>
